<compile_context>
chip_gen: v7x
topology: tpu7x:2x2x1
jax: 0.10.0
libtpu: 0.0.40
codegen_flags: <defaults>
</compile_context>

<pallas_src>
import functools

import jax
import jax.numpy as jnp
from jax.experimental import pallas as pl
from jax.experimental.pallas import tpu as pltpu

K = 128  # hidden / output lane width (full 128-lane tiles)


def _round_up(n, m):
    return ((n + m - 1) // m) * m


def _discriminator_kernel(x_ref, w_ref, b_ref, out_ref, *, num_classes, d_pad):
    # x_ref:   (tb, d_pad)        f32   unpadded-ish input (lane-padded only to mult of 16)
    # w_ref:   (d_pad+256, 128)   bf16  rows [0:d_pad)=W1p, [d_pad:d_pad+128)=W2p,
    #                                   [d_pad+128:d_pad+256)=W_heads_p
    # b_ref:   (8, 128)           f32   row 0=b1, row 1=[b2|0], row 2=[bv|bl|0]
    # out_ref: (tb, 128)          bf16  col 0 = sigmoid(validity), cols 1..C = softmax(label)
    x = x_ref[...].astype(jnp.bfloat16)

    w1 = w_ref[0:d_pad, :]
    w2 = w_ref[d_pad:d_pad + 128, :]
    wh = w_ref[d_pad + 128:d_pad + 256, :]

    b1 = b_ref[0:1, :]
    b2 = b_ref[1:2, :]
    bh = b_ref[2:3, :]

    # Linear(input_dim, 128) + LeakyReLU(0.2)   (f32 accumulate, f32 epilogue)
    h1 = jnp.dot(x, w1, preferred_element_type=jnp.float32) + b1
    h1 = jnp.maximum(h1, 0.2 * h1)

    # Linear(128, 64) + LeakyReLU(0.2)   (output lanes 64..127 are zero-padded)
    h2 = jnp.dot(h1.astype(jnp.bfloat16), w2, preferred_element_type=jnp.float32) + b2
    h2 = jnp.maximum(h2, 0.2 * h2)

    # Fused heads: one matmul, col 0 = validity logit, cols 1..C = label logits.
    logits = jnp.dot(h2.astype(jnp.bfloat16), wh, preferred_element_type=jnp.float32) + bh

    lane = jax.lax.broadcasted_iota(jnp.int32, logits.shape, 1)
    is_label = (lane >= 1) & (lane <= num_classes)

    # softmax over label columns only (max-subtracted, masked)
    masked = jnp.where(is_label, logits, jnp.float32(-1e30))
    m = jnp.max(masked, axis=-1, keepdims=True)
    e = jnp.where(is_label, jnp.exp(masked - m), jnp.float32(0.0))
    denom = jnp.sum(e, axis=-1, keepdims=True)
    probs = e * pl.reciprocal(denom, approx=True)

    sig = jax.nn.sigmoid(logits)  # only lane 0 is used

    out_ref[...] = jnp.where(lane == 0, sig, probs).astype(out_ref.dtype)


def discriminator_forward(x, params, *, block_b=None):
    """x: (B, input_dim) float32. params: dict with w1,b1,w2,b2,wv,bv,wl,bl
    stored as (in_features, out_features) / (1, out_features).
    Returns (validity (B,1), label (B,num_classes)) in bfloat16."""
    B, D = x.shape
    C = int(params["wl"].shape[1])
    assert D <= K, "input_dim must fit one 128-lane tile"
    assert C <= K - 1, "num_classes must fit beside the validity column"

    f32, bf16 = jnp.float32, jnp.bfloat16

    Dp = _round_up(D, 16)          # keep bf16 weight-slab slices sublane-aligned
    B_pad = _round_up(B, 16)       # bf16 output sublane packing; never pad to a full block

    if block_b is None:
        if B_pad >= 32:
            # >=2 grid steps so dimension_semantics=("parallel",) can use both v7x TCs;
            # cap at 4096 rows to amortize the ~0.35 us per-grid-step overhead.
            block_b = min(4096, _round_up(pl.cdiv(B_pad, 2), 16))
        else:
            block_b = B_pad
    nb = pl.cdiv(B_pad, block_b)   # last block may be partial; Pallas masks it

    # --- pack parameters into one lane-dense bf16 weight slab + one f32 bias slab ---
    w1p = jnp.zeros((Dp, K), f32).at[:D, :].set(params["w1"])
    w2p = jnp.zeros((K, K), f32).at[:, :64].set(params["w2"])
    whp = jnp.zeros((K, K), f32)
    whp = whp.at[:64, 0:1].set(params["wv"])
    whp = whp.at[:64, 1:1 + C].set(params["wl"])
    w_all = jnp.concatenate([w1p, w2p, whp], axis=0).astype(bf16)  # (Dp+256, 128)

    biases = jnp.zeros((8, K), f32)
    biases = biases.at[0, :].set(params["b1"].reshape(-1))
    biases = biases.at[1, :64].set(params["b2"].reshape(-1))
    biases = biases.at[2, 0:1].set(params["bv"].reshape(-1))
    biases = biases.at[2, 1:1 + C].set(params["bl"].reshape(-1))

    # x stays f32 and (almost) unpadded; cast to bf16 happens inside the kernel.
    if B_pad != B or Dp != D:
        xp = jnp.zeros((B_pad, Dp), f32).at[:B, :D].set(x)
    else:
        xp = x

    out = pl.pallas_call(
        functools.partial(_discriminator_kernel, num_classes=C, d_pad=Dp),
        out_shape=jax.ShapeDtypeStruct((B_pad, K), bf16),
        grid=(nb,),
        in_specs=[
            pl.BlockSpec((block_b, Dp), lambda i: (i, 0)),       # x tile (f32, narrow lanes)
            pl.BlockSpec((Dp + 2 * K, K), lambda i: (0, 0)),     # packed weights (resident)
            pl.BlockSpec((8, K), lambda i: (0, 0)),              # packed biases (resident)
        ],
        out_specs=pl.BlockSpec((block_b, K), lambda i: (i, 0)),
        compiler_params=pltpu.CompilerParams(
            dimension_semantics=("parallel",),
            # ~20 MiB peak at block_b=4096 (IO double-buffers + f32 temporaries);
            # 40 MiB leaves headroom and stays well under v7x's 64 MiB VMEM.
            vmem_limit_bytes=40 * 1024 * 1024,
        ),
    )(xp, w_all, biases)

    # single slice of the useful lanes, split on the host
    packed = out[:B, :1 + C]
    validity = packed[:, :1]
    label = packed[:, 1:]
    return validity, label


def init_params(key, input_dim, num_classes):
    ks = jax.random.split(key, 8)
    scale = 0.1

    def lin(kw, kb, fan_in, fan_out):
        w = scale * jax.random.normal(kw, (fan_in, fan_out), dtype=jnp.float32)
        b = scale * jax.random.normal(kb, (1, fan_out), dtype=jnp.float32)
        return w, b

    w1, b1 = lin(ks[0], ks[1], input_dim, 128)
    w2, b2 = lin(ks[2], ks[3], 128, 64)
    wv, bv = lin(ks[4], ks[5], 64, 1)
    wl, bl = lin(ks[6], ks[7], 64, num_classes)
    return dict(w1=w1, b1=b1, w2=w2, b2=b2, wv=wv, bv=bv, wl=wl, bl=bl)


def _reference(x, p):
    # Pure-JAX reference (f32 math on the bf16-quantized inputs/weights used by the kernel)
    q = lambda a: a.astype(jnp.bfloat16).astype(jnp.float32)
    xq = q(x)
    z1 = xq @ q(p["w1"]) + p["b1"]
    h1 = jnp.where(z1 > 0, z1, 0.2 * z1)
    z2 = h1 @ q(p["w2"]) + p["b2"]
    h2 = jnp.where(z2 > 0, z2, 0.2 * z2)
    v = jax.nn.sigmoid(h2 @ q(p["wv"]) + p["bv"])
    lab = jax.nn.softmax(h2 @ q(p["wl"]) + p["bl"], axis=1)
    return v, lab


if __name__ == "__main__":
    key = jax.random.PRNGKey(0)
    k_x, k_p, k_x2 = jax.random.split(key, 3)

    input_dim, num_classes = 32, 10
    params = init_params(k_p, input_dim, num_classes)

    # bf16 activations + bf16 output slab + approx (EUP) softmax reciprocal => relaxed tolerance
    atol = rtol = 2e-2

    # Test 1: tiny batch (single grid step)
    B = 8
    x = jax.random.normal(k_x, (B, input_dim), dtype=jnp.float32)
    validity, label = discriminator_forward(x, params)
    jax.block_until_ready((validity, label))
    v_ref, l_ref = _reference(x, params)
    assert validity.shape == (B, 1) and label.shape == (B, num_classes)
    assert jnp.allclose(validity.astype(jnp.float32), v_ref, atol=atol, rtol=rtol), "validity mismatch"
    assert jnp.allclose(label.astype(jnp.float32), l_ref, atol=atol, rtol=rtol), "label mismatch"
    assert jnp.allclose(jnp.sum(label.astype(jnp.float32), axis=1), 1.0, atol=2e-2), "softmax rows not ~1"

    # Test 2: multi-step grid with a partial last block (B=200 -> 2 parallel steps)
    B2 = 200
    x2 = jax.random.normal(k_x2, (B2, input_dim), dtype=jnp.float32)
    validity2, label2 = discriminator_forward(x2, params)
    jax.block_until_ready((validity2, label2))
    v_ref2, l_ref2 = _reference(x2, params)
    assert validity2.shape == (B2, 1) and label2.shape == (B2, num_classes)
    assert jnp.allclose(validity2.astype(jnp.float32), v_ref2, atol=atol, rtol=rtol), "validity mismatch (B=200)"
    assert jnp.allclose(label2.astype(jnp.float32), l_ref2, atol=atol, rtol=rtol), "label mismatch (B=200)"
    assert jnp.allclose(jnp.sum(label2.astype(jnp.float32), axis=1), 1.0, atol=2e-2), "softmax rows not ~1 (B=200)"

    print("KERNEL_OK")
</pallas_src>

<mosaic_0001>
module attributes {stable_mosaic.version = 11 : i64} {
  func.func @_discriminator_kernel(%arg0: i32, %arg1: memref<16x32xf32, #tpu.memory_space<vmem>>, %arg2: memref<288x128xbf16, #tpu.memory_space<vmem>>, %arg3: memref<8x128xf32, #tpu.memory_space<vmem>>, %arg4: memref<16x128xbf16, #tpu.memory_space<vmem>>) attributes {dimension_semantics = [#tpu.dimension_semantics<parallel>], iteration_bounds = array<i64: 1>, scalar_prefetch = 0 : i64, scratch_operands = 0 : i64, tpu.core_type = #tpu.core_type<tc>, window_params = [{transform_indices = @transform_0, window_bounds = array<i64: 16, 32>}, {pipeline_mode = #tpu.pipeline_mode<synchronous>, transform_indices = @transform_1, window_bounds = array<i64: 288, 128>}, {pipeline_mode = #tpu.pipeline_mode<synchronous>, transform_indices = @transform_2, window_bounds = array<i64: 8, 128>}, {transform_indices = @transform_3, window_bounds = array<i64: 16, 128>}]} {
    %c0 = arith.constant 0 : index
    %c0_0 = arith.constant 0 : index
    %0 = vector.load %arg1[%c0, %c0_0] : memref<16x32xf32, #tpu.memory_space<vmem>>, vector<16x32xf32>
    %1 = arith.truncf %0 : vector<16x32xf32> to vector<16x32xbf16>
    %c0_1 = arith.constant 0 : index
    %c0_2 = arith.constant 0 : index
    %2 = vector.load %arg2[%c0_1, %c0_2] : memref<288x128xbf16, #tpu.memory_space<vmem>>, vector<32x128xbf16>
    %c32 = arith.constant 32 : index
    %c0_3 = arith.constant 0 : index
    %3 = vector.load %arg2[%c32, %c0_3] : memref<288x128xbf16, #tpu.memory_space<vmem>>, vector<128x128xbf16>
    %c160 = arith.constant 160 : index
    %c0_4 = arith.constant 0 : index
    %4 = vector.load %arg2[%c160, %c0_4] : memref<288x128xbf16, #tpu.memory_space<vmem>>, vector<128x128xbf16>
    %c0_5 = arith.constant 0 : index
    %c0_6 = arith.constant 0 : index
    %5 = vector.load %arg3[%c0_5, %c0_6] : memref<8x128xf32, #tpu.memory_space<vmem>>, vector<1x128xf32>
    %c1 = arith.constant 1 : index
    %c0_7 = arith.constant 0 : index
    %6 = vector.load %arg3[%c1, %c0_7] : memref<8x128xf32, #tpu.memory_space<vmem>>, vector<1x128xf32>
    %c2 = arith.constant 2 : index
    %c0_8 = arith.constant 0 : index
    %7 = vector.load %arg3[%c2, %c0_8] : memref<8x128xf32, #tpu.memory_space<vmem>>, vector<1x128xf32>
    %cst = arith.constant dense<0.000000e+00> : vector<16x128xf32>
    %8 = tpu.matmul %1, %2, %cst {dimension_numbers = #tpu.dot_dimension_numbers<[1], [0], [0], [1], [0, 0, 1, 1], [], []>} : vector<16x32xbf16>, vector<32x128xbf16>, vector<16x128xf32> -> vector<16x128xf32>
    %9 = vector.broadcast %5 : vector<1x128xf32> to vector<16x128xf32>
    %10 = arith.addf %8, %9 : vector<16x128xf32>
    %cst_9 = arith.constant 2.000000e-01 : f32
    %11 = vector.broadcast %cst_9 : f32 to vector<16x128xf32>
    %12 = arith.mulf %11, %10 : vector<16x128xf32>
    %13 = arith.maximumf %10, %12 : vector<16x128xf32>
    %14 = arith.truncf %13 : vector<16x128xf32> to vector<16x128xbf16>
    %cst_10 = arith.constant dense<0.000000e+00> : vector<16x128xf32>
    %15 = tpu.matmul %14, %3, %cst_10 {dimension_numbers = #tpu.dot_dimension_numbers<[1], [0], [0], [1], [0, 0, 1, 1], [], []>} : vector<16x128xbf16>, vector<128x128xbf16>, vector<16x128xf32> -> vector<16x128xf32>
    %16 = vector.broadcast %6 : vector<1x128xf32> to vector<16x128xf32>
    %17 = arith.addf %15, %16 : vector<16x128xf32>
    %cst_11 = arith.constant 2.000000e-01 : f32
    %18 = vector.broadcast %cst_11 : f32 to vector<16x128xf32>
    %19 = arith.mulf %18, %17 : vector<16x128xf32>
    %20 = arith.maximumf %17, %19 : vector<16x128xf32>
    %21 = arith.truncf %20 : vector<16x128xf32> to vector<16x128xbf16>
    %cst_12 = arith.constant dense<0.000000e+00> : vector<16x128xf32>
    %22 = tpu.matmul %21, %4, %cst_12 {dimension_numbers = #tpu.dot_dimension_numbers<[1], [0], [0], [1], [0, 0, 1, 1], [], []>} : vector<16x128xbf16>, vector<128x128xbf16>, vector<16x128xf32> -> vector<16x128xf32>
    %23 = vector.broadcast %7 : vector<1x128xf32> to vector<16x128xf32>
    %24 = arith.addf %22, %23 : vector<16x128xf32>
    %25 = tpu.iota {dimensions = array<i32: 1>} : vector<16x128xi32>
    %c1_i32 = arith.constant 1 : i32
    %26 = vector.broadcast %c1_i32 : i32 to vector<16x128xi32>
    %27 = arith.cmpi sge, %25, %26 : vector<16x128xi32>
    %c10_i32 = arith.constant 10 : i32
    %28 = vector.broadcast %c10_i32 : i32 to vector<16x128xi32>
    %29 = arith.cmpi sle, %25, %28 : vector<16x128xi32>
    %30 = arith.andi %27, %29 : vector<16x128xi1>
    %cst_13 = arith.constant -1.000000e+30 : f32
    %31 = vector.broadcast %cst_13 : f32 to vector<16x128xf32>
    %32 = arith.select %30, %24, %31 : vector<16x128xi1>, vector<16x128xf32>
    %cst_14 = arith.constant dense<0xFF800000> : vector<16xf32>
    %33 = vector.multi_reduction <maximumf>, %32, %cst_14 [1] : vector<16x128xf32> to vector<16xf32>
    %34 = vector.shape_cast %33 : vector<16xf32> to vector<16x1xf32>
    %35 = vector.broadcast %34 : vector<16x1xf32> to vector<16x128xf32>
    %36 = arith.subf %32, %35 : vector<16x128xf32>
    %37 = math.exp %36 : vector<16x128xf32>
    %cst_15 = arith.constant 0.000000e+00 : f32
    %38 = vector.broadcast %cst_15 : f32 to vector<16x128xf32>
    %39 = arith.select %30, %37, %38 : vector<16x128xi1>, vector<16x128xf32>
    %cst_16 = arith.constant dense<0.000000e+00> : vector<16xf32>
    %40 = vector.multi_reduction <add>, %39, %cst_16 [1] : vector<16x128xf32> to vector<16xf32>
    %41 = vector.shape_cast %40 : vector<16xf32> to vector<16x1xf32>
    %42 = tpu.reciprocal %41 {approx = true} : vector<16x1xf32> -> vector<16x1xf32>
    %43 = vector.broadcast %42 : vector<16x1xf32> to vector<16x128xf32>
    %44 = arith.mulf %39, %43 : vector<16x128xf32>
    %45 = arith.negf %24 : vector<16x128xf32>
    %46 = math.exp %45 : vector<16x128xf32>
    %cst_17 = arith.constant 1.000000e+00 : f32
    %47 = vector.broadcast %cst_17 : f32 to vector<16x128xf32>
    %48 = arith.addf %47, %46 : vector<16x128xf32>
    %49 = arith.divf %47, %48 : vector<16x128xf32>
    %c0_i32 = arith.constant 0 : i32
    %50 = vector.broadcast %c0_i32 : i32 to vector<16x128xi32>
    %51 = arith.cmpi eq, %25, %50 : vector<16x128xi32>
    %52 = arith.select %51, %49, %44 : vector<16x128xi1>, vector<16x128xf32>
    %53 = arith.truncf %52 : vector<16x128xf32> to vector<16x128xbf16>
    %c0_18 = arith.constant 0 : index
    %c0_19 = arith.constant 0 : index
    %54 = vector.load %arg4[%c0_18, %c0_19] : memref<16x128xbf16, #tpu.memory_space<vmem>>, vector<16x128xbf16>
    tpu.vector_store %arg4[%c0_18, %c0_19], %53 {strides = array<i32>} : memref<16x128xbf16, #tpu.memory_space<vmem>>, vector<16x128xbf16>,
    return
  }
  func.func @transform_0(%arg0: i32) -> (i32, i32) {
    %c0_i32 = arith.constant 0 : i32
    %c0_i32_0 = arith.constant 0 : i32
    return %arg0, %c0_i32 : i32, i32
  }
  func.func @transform_1(%arg0: i32) -> (i32, i32) {
    %c0_i32 = arith.constant 0 : i32
    %c0_i32_0 = arith.constant 0 : i32
    %c0_i32_1 = arith.constant 0 : i32
    return %c0_i32, %c0_i32_0 : i32, i32
  }
  func.func @transform_2(%arg0: i32) -> (i32, i32) {
    %c0_i32 = arith.constant 0 : i32
    %c0_i32_0 = arith.constant 0 : i32
    %c0_i32_1 = arith.constant 0 : i32
    return %c0_i32, %c0_i32_0 : i32, i32
  }
  func.func @transform_3(%arg0: i32) -> (i32, i32) {
    %c0_i32 = arith.constant 0 : i32
    %c0_i32_0 = arith.constant 0 : i32
    return %arg0, %c0_i32 : i32, i32
  }
}

</mosaic_0001>

<llo_original>
// kernel: tpu_custom_call.1
$region0: #{tpu_custom_call.1}
  #allocation0 [shape = 'u32[]', space=smem, size = 0x4, offset = 0x4, fixed_abs, tag = 'smem constant byte address 0x4 - core index']
  #allocation1 [shape = 'u32[144,128]{1,0:T(1,128)}', space=vmem, size = 0x12000, scoped, tag = 'internal scratch']
  %s0 = inlined_call_operand.hbm [shape: f32[16,32], index: 0, kind: input, shape index: {}]
  %s1 = inlined_call_operand.hbm [shape: bf16[288,128], index: 1, kind: input, shape index: {}]
  %s2 = inlined_call_operand.hbm [shape: f32[8,128], index: 2, kind: input, shape index: {}]
  %s3 = inlined_call_operand.hbm [shape: bf16[16,128], index: 3, kind: output, shape index: {}]
  %s4 = sld [smem:[#allocation0]]
  $region34: #{tpu_custom_call.1} parent=0
    _
  %s6 = ssub.s32 1, %s4
  %s7 = scalar_select 0, %s6, %s4
  $region1: #{tpu_custom_call.1} parent=0
    #allocation2 [shape = 'u8[8192]{0}', space=vmem, size = 0x2000, scoped, tag = 'input window, operand 0, single buffered']
    #allocation3 [shape = 's32[1]{0}', space=sflag, size = 0x4, scoped, tag = 'scoped memory for tpu_custom_call.1']
    #allocation4 [shape = 's32[1]{0}', space=sflag, size = 0x4, scoped, tag = 'scoped memory for tpu_custom_call.1']
    #allocation5 [shape = 'u8[73728]{0}', space=vmem, size = 0x12000, scoped, tag = 'input window, operand 1, single buffered']
    #allocation6 [shape = 's32[1]{0}', space=sflag, size = 0x4, scoped, tag = 'scoped memory for tpu_custom_call.1']
    #allocation7 [shape = 'u8[4096]{0}', space=vmem, size = 0x1000, scoped, tag = 'input window, operand 2, single buffered']
    #allocation8 [shape = 'u8[4096]{0}', space=vmem, size = 0x1000, scoped, tag = 'output window, operand 0, single buffered']
    %8 = vsyncpa [#allocation3], 0
    %9 = vsyncpa [#allocation6], 0
    %10 = vsyncpa [#allocation4], 0
    // Predicated region
    $region2: #{tpu_custom_call.1} parent=1 // pred_check
      _
    $region3: #{tpu_custom_call.1} parent=1 // pred_check_branch
      %12 = sbr.rel (0) target = $region5
    $region4: #{tpu_custom_call.1} parent=1 // pred_region
      %s14 = ssub.s32 256, 256
      %15 = vsyncadd [#allocation3], %s14
      %s16 = sshll.u32 [#allocation2], 4
      %s17 = int_to_ptr.vmem [resolvable:$true] %s16
      %22 = dma.hbm_to_vmem [thread:$0]  %s0, 256, %s17, [#allocation3], 128, 128, 8
    $region5: #{tpu_custom_call.1} parent=1 // pred_fallthru
      _
    // Predicated region
    $region6: #{tpu_custom_call.1} parent=1 // pred_check
      _
    $region7: #{tpu_custom_call.1} parent=1 // pred_check_branch
      %24 = sbr.rel (0) target = $region9
    $region8: #{tpu_custom_call.1} parent=1 // pred_region
      %s26 = ssub.s32 2304, 2304
      %27 = vsyncadd [#allocation6], %s26
      %s28 = sshll.u32 [#allocation5], 4
      %s29 = int_to_ptr.vmem [resolvable:$true] %s28
      %34 = dma.hbm_to_vmem [thread:$0]  %s1, 2304, %s29, [#allocation6], 64, 64, 4
    $region9: #{tpu_custom_call.1} parent=1 // pred_fallthru
      _
    // Predicated region
    $region10: #{tpu_custom_call.1} parent=1 // pred_check
      _
    $region11: #{tpu_custom_call.1} parent=1 // pred_check_branch
      %36 = sbr.rel (0) target = $region13
    $region12: #{tpu_custom_call.1} parent=1 // pred_region
      %s38 = ssub.s32 128, 128
      %39 = vsyncadd [#allocation6], %s38
      %s41 = sshll.u32 [#allocation7], 4
      %s42 = int_to_ptr.vmem [resolvable:$true] %s41
      %44 = dma.hbm_to_vmem [thread:$0]  %s2, 128, %s42, [#allocation6]
    $region13: #{tpu_custom_call.1} parent=1 // pred_fallthru
      _
    // Predicated region
    $region14: #{tpu_custom_call.1} parent=1 // pred_check
      _
    $region15: #{tpu_custom_call.1} parent=1 // pred_check_branch
      %46 = sbr.rel (0) target = $region17
    $region16: #{tpu_custom_call.1} parent=1 // pred_region
      %47 = dma.done [#allocation3], 256
    $region17: #{tpu_custom_call.1} parent=1 // pred_fallthru
      _
    // Predicated region
    $region18: #{tpu_custom_call.1} parent=1 // pred_check
      _
    $region19: #{tpu_custom_call.1} parent=1 // pred_check_branch
      %49 = sbr.rel (0) target = $region21
    $region20: #{tpu_custom_call.1} parent=1 // pred_region
      %50 = dma.done [#allocation6], 2304
    $region21: #{tpu_custom_call.1} parent=1 // pred_fallthru
      _
    // Predicated region
    $region22: #{tpu_custom_call.1} parent=1 // pred_check
      _
    $region23: #{tpu_custom_call.1} parent=1 // pred_check_branch
      %52 = sbr.rel (0) target = $region25
    $region24: #{tpu_custom_call.1} parent=1 // pred_region
      %53 = dma.done [#allocation6], 128
    $region25: #{tpu_custom_call.1} parent=1 // pred_fallthru
      _
    %v55 = vld [vmem:[#allocation2] sm:$0xff]
    %v56 = vld [vmem:[#allocation2 + $0x8] sm:$0xff]
    %v57 = vpack.c.bf16 %v56, %v55
    %v58 = vld [vmem:[#allocation5] sm:$0xf]
    %v59 = vld [vmem:[#allocation5 + $0x4] sm:$0xf]
    %v60 = vld [vmem:[#allocation5 + $0x8] sm:$0xf]
    %v61 = vld [vmem:[#allocation5 + $0xc] sm:$0xf]
    %v62 = vld [vmem:[#allocation5 + $0x10] sm:$0xf]
    %v63 = vld [vmem:[#allocation5 + $0x14] sm:$0xf]
    %v64 = vld [vmem:[#allocation5 + $0x18] sm:$0xf]
    %v65 = vld [vmem:[#allocation5 + $0x1c] sm:$0xf]
    %v66 = vld [vmem:[#allocation5 + $0x20] sm:$0xf]
    %v67 = vld [vmem:[#allocation5 + $0x24] sm:$0xf]
    %v68 = vld [vmem:[#allocation5 + $0x28] sm:$0xf]
    %v69 = vld [vmem:[#allocation5 + $0x2c] sm:$0xf]
    %v70 = vld [vmem:[#allocation5 + $0x30] sm:$0xf]
    %v71 = vld [vmem:[#allocation5 + $0x34] sm:$0xf]
    %v72 = vld [vmem:[#allocation5 + $0x38] sm:$0xf]
    %v73 = vld [vmem:[#allocation5 + $0x3c] sm:$0xf]
    %v74 = vld [vmem:[#allocation5 + $0x40] sm:$0xf]
    %v75 = vld [vmem:[#allocation5 + $0x44] sm:$0xf]
    %v76 = vld [vmem:[#allocation5 + $0x48] sm:$0xf]
    %v77 = vld [vmem:[#allocation5 + $0x4c] sm:$0xf]
    %v78 = vld [vmem:[#allocation5 + $0x50] sm:$0xf]
    %v79 = vld [vmem:[#allocation5 + $0x54] sm:$0xf]
    %v80 = vld [vmem:[#allocation5 + $0x58] sm:$0xf]
    %v81 = vld [vmem:[#allocation5 + $0x5c] sm:$0xf]
    %v82 = vld [vmem:[#allocation5 + $0x60] sm:$0xf]
    %v83 = vld [vmem:[#allocation5 + $0x64] sm:$0xf]
    %v84 = vld [vmem:[#allocation5 + $0x68] sm:$0xf]
    %v85 = vld [vmem:[#allocation5 + $0x6c] sm:$0xf]
    %v86 = vld [vmem:[#allocation5 + $0x70] sm:$0xf]
    %v87 = vld [vmem:[#allocation5 + $0x74] sm:$0xf]
    %v88 = vld [vmem:[#allocation5 + $0x78] sm:$0xf]
    %v89 = vld [vmem:[#allocation5 + $0x7c] sm:$0xf]
    %v90 = vld [vmem:[#allocation5 + $0x80] sm:$0xf]
    %v91 = vld [vmem:[#allocation5 + $0x84] sm:$0xf]
    %v92 = vld [vmem:[#allocation5 + $0x88] sm:$0xf]
    %v93 = vld [vmem:[#allocation5 + $0x8c] sm:$0xf]
    %v94 = vld [vmem:[#allocation7] sm:$0x1]
    %v95 = vld [vmem:[#allocation7 + $0x1] sm:$0x1]
    %v96 = vld [vmem:[#allocation7 + $0x2] sm:$0x1]
    %v97 = vlaneseq
    %v98 = vshrl.u32 %v97, 7
    %v99 = vsub.s32 0, %v98
    %v100 = vrot.slane %v94, %v99
    %v105 = vunpack.c.l.b16 %v58
    %v106 = vunpack.c.l.b16 %v59
    %v107 = vunpack.c.l.b16 %v60
    %v108 = vunpack.c.l.b16 %v61
    %v109 = vpack.c.b16 %v106, %v105
    %v110 = vpack.c.b16 %v108, %v107
    %vm113 = vcmask 261120
    %v115 = vsel %vm113, %v57, 0
    %117 = vmatprep.subr.bf16.mxu0 0
    %118 = vmatpush1.bf16.msra.mxu0 %v109
    %119 = vmatprep.subr.bf16.mxu0 0
    %120 = vmatpush1.bf16.msra.mxu0 %v110
    %121 = vmatprep.subr.bf16.mxu0 0
    %122 = vmatpush1.bf16.msra.mxu0 0
    %123 = vmatprep.subr.bf16.mxu0 0
    %124 = vmatpush1.bf16.msra.mxu0 0
    %125 = vmatprep.subr.bf16.mxu0 0
    %126 = vmatpush1.bf16.msra.mxu0 0
    %127 = vmatprep.subr.bf16.mxu0 0
    %128 = vmatpush1.bf16.msra.mxu0 0
    %129 = vmatprep.subr.bf16.mxu0 0
    %130 = vmatpush1.bf16.msra.mxu0 0
    %131 = vmatprep.subr.bf16.mxu0 0
    %132 = vmatpush1.bf16.msra.mxu0 0
    %133 = vmatprep.subr.bf16.mxu0 0
    %134 = vmatpush1.bf16.msra.mxu0 0
    %135 = vmatprep.subr.bf16.mxu0 0
    %136 = vmatpush1.bf16.msra.mxu0 0
    %137 = vmatprep.subr.bf16.mxu0 0
    %138 = vmatpush1.bf16.msra.mxu0 0
    %139 = vmatprep.subr.bf16.mxu0 0
    %140 = vmatpush1.bf16.msra.mxu0 0
    %141 = vmatprep.subr.bf16.mxu0 0
    %142 = vmatpush1.bf16.msra.mxu0 0
    %143 = vmatprep.subr.bf16.mxu0 0
    %144 = vmatpush1.bf16.msra.mxu0 0
    %145 = vmatprep.subr.bf16.mxu0 0
    %146 = vmatpush1.bf16.msra.mxu0 0
    %147 = vmatprep.subr.bf16.mxu0 0
    %148 = vmatpush1.bf16.msra.mxu0 0
    %149 = vmatprep.mubr.bf16.mxu0 0
    %150 = vmatmul.mubr.bf16.gmra.mrb[0].mxu0 %v115
    %v151 = vpop.f32.mrb[0].mxu0
    %v152 = vadd.f32 %v100, %v151
    %v153 = vpop.f32.mrb[0].mxu0
    %v154 = vpop.f32.mrb[0].mxu0
    %v155 = vadd.f32 %v100, %v154
    %v156 = vpop.f32.mrb[0].mxu0
    %157 = vdwg.mxu0
    %v158 = vmul.f32 %v152, 0.2
    %v159 = vmul.f32 %v155, 0.2
    %v160 = vmax.f32 %v152, %v158
    %v161 = vmax.f32 %v155, %v159
    %v162 = vpack.c.bf16 %v161, %v160
    %v163 = vlaneseq
    %v164 = vshrl.u32 %v163, 7
    %v165 = vsub.s32 0, %v164
    %v166 = vrot.slane %v95, %v165
    %v183 = vunpack.c.l.b16 %v62
    %v184 = vunpack.c.l.b16 %v63
    %v185 = vunpack.c.l.b16 %v64
    %v186 = vunpack.c.l.b16 %v65
    %v187 = vunpack.c.l.b16 %v66
    %v188 = vunpack.c.l.b16 %v67
    %v189 = vunpack.c.l.b16 %v68
    %v190 = vunpack.c.l.b16 %v69
    %v191 = vunpack.c.l.b16 %v70
    %v192 = vunpack.c.l.b16 %v71
    %v193 = vunpack.c.l.b16 %v72
    %v194 = vunpack.c.l.b16 %v73
    %v195 = vunpack.c.l.b16 %v74
    %v196 = vunpack.c.l.b16 %v75
    %v197 = vunpack.c.l.b16 %v76
    %v198 = vunpack.c.l.b16 %v77
    %v199 = vpack.c.b16 %v184, %v183
    %v200 = vpack.c.b16 %v186, %v185
    %v201 = vpack.c.b16 %v188, %v187
    %v202 = vpack.c.b16 %v190, %v189
    %v203 = vpack.c.b16 %v192, %v191
    %v204 = vpack.c.b16 %v194, %v193
    %v205 = vpack.c.b16 %v196, %v195
    %v206 = vpack.c.b16 %v198, %v197
    %215 = vmatprep.subr.bf16.mxu0 0
    %216 = vmatpush1.bf16.msra.mxu0 %v199
    %217 = vmatprep.subr.bf16.mxu0 0
    %218 = vmatpush1.bf16.msra.mxu0 %v200
    %219 = vmatprep.subr.bf16.mxu0 0
    %220 = vmatpush1.bf16.msra.mxu0 %v201
    %221 = vmatprep.subr.bf16.mxu0 0
    %222 = vmatpush1.bf16.msra.mxu0 %v202
    %223 = vmatprep.subr.bf16.mxu0 0
    %224 = vmatpush1.bf16.msra.mxu0 %v203
    %225 = vmatprep.subr.bf16.mxu0 0
    %226 = vmatpush1.bf16.msra.mxu0 %v204
    %227 = vmatprep.subr.bf16.mxu0 0
    %228 = vmatpush1.bf16.msra.mxu0 %v205
    %229 = vmatprep.subr.bf16.mxu0 0
    %230 = vmatpush1.bf16.msra.mxu0 %v206
    %231 = vmatprep.subr.bf16.mxu0 0
    %232 = vmatpush1.bf16.msra.mxu0 0
    %233 = vmatprep.subr.bf16.mxu0 0
    %234 = vmatpush1.bf16.msra.mxu0 0
    %235 = vmatprep.subr.bf16.mxu0 0
    %236 = vmatpush1.bf16.msra.mxu0 0
    %237 = vmatprep.subr.bf16.mxu0 0
    %238 = vmatpush1.bf16.msra.mxu0 0
    %239 = vmatprep.subr.bf16.mxu0 0
    %240 = vmatpush1.bf16.msra.mxu0 0
    %241 = vmatprep.subr.bf16.mxu0 0
    %242 = vmatpush1.bf16.msra.mxu0 0
    %243 = vmatprep.subr.bf16.mxu0 0
    %244 = vmatpush1.bf16.msra.mxu0 0
    %245 = vmatprep.subr.bf16.mxu0 0
    %246 = vmatpush1.bf16.msra.mxu0 0
    %247 = vmatprep.mubr.bf16.mxu0 0
    %248 = vmatmul.mubr.bf16.gmra.mrb[0].mxu0 %v162
    %v249 = vpop.f32.mrb[0].mxu0
    %v250 = vadd.f32 %v166, %v249
    %v251 = vpop.f32.mrb[0].mxu0
    %v252 = vpop.f32.mrb[0].mxu0
    %v253 = vadd.f32 %v166, %v252
    %v254 = vpop.f32.mrb[0].mxu0
    %255 = vdwg.mxu0
    %v256 = vmul.f32 %v250, 0.2
    %v257 = vmul.f32 %v253, 0.2
    %v258 = vmax.f32 %v250, %v256
    %v259 = vmax.f32 %v253, %v257
    %v260 = vpack.c.bf16 %v259, %v258
    %v261 = vlaneseq
    %v262 = vshrl.u32 %v261, 7
    %v263 = vsub.s32 0, %v262
    %v264 = vrot.slane %v96, %v263
    %v281 = vunpack.c.l.b16 %v78
    %v282 = vunpack.c.l.b16 %v79
    %v283 = vunpack.c.l.b16 %v80
    %v284 = vunpack.c.l.b16 %v81
    %v285 = vunpack.c.l.b16 %v82
    %v286 = vunpack.c.l.b16 %v83
    %v287 = vunpack.c.l.b16 %v84
    %v288 = vunpack.c.l.b16 %v85
    %v289 = vunpack.c.l.b16 %v86
    %v290 = vunpack.c.l.b16 %v87
    %v291 = vunpack.c.l.b16 %v88
    %v292 = vunpack.c.l.b16 %v89
    %v293 = vunpack.c.l.b16 %v90
    %v294 = vunpack.c.l.b16 %v91
    %v295 = vunpack.c.l.b16 %v92
    %v296 = vunpack.c.l.b16 %v93
    %v297 = vpack.c.b16 %v282, %v281
    %v298 = vpack.c.b16 %v284, %v283
    %v299 = vpack.c.b16 %v286, %v285
    %v300 = vpack.c.b16 %v288, %v287
    %v301 = vpack.c.b16 %v290, %v289
    %v302 = vpack.c.b16 %v292, %v291
    %v303 = vpack.c.b16 %v294, %v293
    %v304 = vpack.c.b16 %v296, %v295
    %313 = vmatprep.subr.bf16.mxu0 0
    %314 = vmatpush1.bf16.msra.mxu0 %v297
    %315 = vmatprep.subr.bf16.mxu0 0
    %316 = vmatpush1.bf16.msra.mxu0 %v298
    %317 = vmatprep.subr.bf16.mxu0 0
    %318 = vmatpush1.bf16.msra.mxu0 %v299
    %319 = vmatprep.subr.bf16.mxu0 0
    %320 = vmatpush1.bf16.msra.mxu0 %v300
    %321 = vmatprep.subr.bf16.mxu0 0
    %322 = vmatpush1.bf16.msra.mxu0 %v301
    %323 = vmatprep.subr.bf16.mxu0 0
    %324 = vmatpush1.bf16.msra.mxu0 %v302
    %325 = vmatprep.subr.bf16.mxu0 0
    %326 = vmatpush1.bf16.msra.mxu0 %v303
    %327 = vmatprep.subr.bf16.mxu0 0
    %328 = vmatpush1.bf16.msra.mxu0 %v304
    %329 = vmatprep.subr.bf16.mxu0 0
    %330 = vmatpush1.bf16.msra.mxu0 0
    %331 = vmatprep.subr.bf16.mxu0 0
    %332 = vmatpush1.bf16.msra.mxu0 0
    %333 = vmatprep.subr.bf16.mxu0 0
    %334 = vmatpush1.bf16.msra.mxu0 0
    %335 = vmatprep.subr.bf16.mxu0 0
    %336 = vmatpush1.bf16.msra.mxu0 0
    %337 = vmatprep.subr.bf16.mxu0 0
    %338 = vmatpush1.bf16.msra.mxu0 0
    %339 = vmatprep.subr.bf16.mxu0 0
    %340 = vmatpush1.bf16.msra.mxu0 0
    %341 = vmatprep.subr.bf16.mxu0 0
    %342 = vmatpush1.bf16.msra.mxu0 0
    %343 = vmatprep.subr.bf16.mxu0 0
    %344 = vmatpush1.bf16.msra.mxu0 0
    %345 = vmatprep.mubr.bf16.mxu0 0
    %346 = vmatmul.mubr.bf16.gmra.mrb[0].mxu0 %v260
    %v347 = vpop.f32.mrb[0].mxu0
    %v348 = vadd.f32 %v264, %v347
    %v349 = vpop.f32.mrb[0].mxu0
    %v350 = vpop.f32.mrb[0].mxu0
    %v351 = vadd.f32 %v264, %v350
    %v352 = vpop.f32.mrb[0].mxu0
    %353 = vdwg.mxu0
    %v354 = vlaneseq
    %v355 = vand.u32 %v354, 127
    %vm356 = vcmp.ge.s32.totalorder %v355, 1
    %vm357 = vcmp.le.s32.totalorder %v355, 10
    %vm358 = vmand %vm356, %vm357
    %v359 = vsel %vm358, %v348, -1e+30
    %v360 = vsel %vm358, %v351, -1e+30
    %361 = vmax.xlane.f32.xlu0 %v359
    %v362 = vpop.xlane.xlu0 %361
    %363 = vmax.xlane.f32.xlu0 %v360
    %v364 = vpop.xlane.xlu0 %363
    %v365 = vsub.f32 %v359, %v362
    %v366 = vsub.f32 %v360, %v364
    %v367 = vmul.f32 %v365, 1.442695
    %v368 = vpow.pop %v367
    %v369 = vmul.f32 %v366, 1.442695
    %v370 = vpow.pop %v369
    %v371 = vsel %vm358, %v368, 0.0
    %v372 = vsel %vm358, %v370, 0.0
    %373 = vadd.xlane.f32.xlu0 %v371
    %v374 = vpop.xlane.xlu0 %373
    %375 = vadd.xlane.f32.xlu0 %v372
    %v376 = vpop.xlane.xlu0 %375
    %v377 = vrcp.pop %v374
    %v378 = vrcp.pop %v376
    %v379 = vmul.f32 %v371, %v377
    %v380 = vmul.f32 %v372, %v378
    %v381 = vxor.u32 %v348, 2147483648
    %v382 = vxor.u32 %v351, 2147483648
    %v383 = vmul.f32 %v381, 1.442695
    %v384 = vpow.pop %v383
    %v385 = vmul.f32 %v382, 1.442695
    %v386 = vpow.pop %v385
    %v387 = vadd.f32 %v384, 1.0
    %v388 = vadd.f32 %v386, 1.0
    %v389 = vrcp.pop %v387
    %v390 = vmul.f32 1.0, %v389
    %v391 = vrcp.pop %v388
    %v392 = vmul.f32 1.0, %v391
    %vm393 = vcmp.eq.s32.totalorder %v355, 0
    %v394 = vsel %vm393, %v390, %v379
    %v395 = vsel %vm393, %v392, %v380
    %v396 = vpack.c.bf16 %v395, %v394
    %v398 = vunpack.c.l.b16 %v396
    %v399 = vunpack.c.h.b16 %v396
    %v400 = vpack.c.b16 %v398, %v398
    %v401 = vpack.c.b16 %v399, %v399
    %404 = vst [vmem:[#allocation8] sm:$0xf] %v400
    %405 = vst [vmem:[#allocation8 + $0x4] sm:$0xf] %v401
    // Predicated region
    $region26: #{tpu_custom_call.1} parent=1 // pred_check
      _
    $region27: #{tpu_custom_call.1} parent=1 // pred_check_branch
      %407 = sbr.rel (0) target = $region29
    $region28: #{tpu_custom_call.1} parent=1 // pred_region
      %s409 = ssub.s32 128, 128
      %410 = vsyncadd [#allocation4], %s409
      %s411 = sshll.u32 [#allocation8], 4
      %s412 = int_to_ptr.vmem [resolvable:$true] %s411
      %417 = dma.vmem_to_hbm [thread:$0]  %s412, 128, %s3, [#allocation4], 64, 64, 4
    $region29: #{tpu_custom_call.1} parent=1 // pred_fallthru
      _
    // Predicated region
    $region30: #{tpu_custom_call.1} parent=1 // pred_check
      _
    $region31: #{tpu_custom_call.1} parent=1 // pred_check_branch
      %419 = sbr.rel (0) target = $region33
    $region32: #{tpu_custom_call.1} parent=1 // pred_region
      %420 = dma.done [#allocation4], 128
    $region33: #{tpu_custom_call.1} parent=1 // pred_fallthru
      _
    %421 = vsyncpa [#allocation3], 1
    %422 = vsyncpa [#allocation6], 1
    %423 = vsyncpa [#allocation4], 1

</llo_original>
